<compile_context>
chip_gen: v5e
topology: v5e:2x2
jax: 0.10.0
libtpu: 0.0.40
codegen_flags: <defaults>
</compile_context>

<pallas_src>
import math

import jax
import jax.numpy as jnp
from jax.experimental import pallas as pl
from jax.experimental.pallas import tpu as pltpu

HIDDEN1, HIDDEN2, HIDDEN3 = 32, 64, 64
LANE = 128              # TPU lane width: pad the output feature dim to this
DEFAULT_BATCH_TILE = 512  # rows per grid step for large batches (multiple of 8)


def _actor_kernel(x_ref,
                  w1_ref, b1_ref,
                  w2_ref, b2_ref,
                  w3_ref, b3_ref,
                  w4_ref, b4_ref,
                  o_ref):
    x = x_ref[...]

    h = jnp.dot(x, w1_ref[...], preferred_element_type=jnp.float32) + b1_ref[...]
    h = jnp.maximum(h, 0.0)                                   # relu(fc1)

    h = jnp.dot(h, w2_ref[...], preferred_element_type=jnp.float32) + b2_ref[...]
    h = jnp.maximum(h, 0.0)                                   # relu(fc2)

    h = jnp.dot(h, w3_ref[...], preferred_element_type=jnp.float32) + b3_ref[...]
    h = jnp.maximum(h, 0.0)                                   # relu(fc3)

    y = jnp.dot(h, w4_ref[...], preferred_element_type=jnp.float32) + b4_ref[...]
    o_ref[...] = jnp.tanh(y).astype(o_ref.dtype)              # tanh(fc4)


def actor_forward(state, params, *, batch_tile=DEFAULT_BATCH_TILE):
    """Runs the Actor forward pass as a single fused, batch-tiled Pallas kernel.

    state:  (B, state_size) float32
    params: dict with w1..w4 stored as (in, out) and b1..b4 as (1, out)
    returns (B, action_size) float32
    """
    B, S = state.shape
    action_size = params["w4"].shape[1]

    # Lane-dense output width (>= 128, multiple of 128).
    n_pad = max(LANE, pl.cdiv(action_size, LANE) * LANE)

    # Zero-pad the final layer so the output store is a full, unmasked vst.
    w4, b4 = params["w4"], params["b4"]
    if n_pad != action_size:
        w4 = jnp.pad(w4, ((0, 0), (0, n_pad - action_size)))
        b4 = jnp.pad(b4, ((0, 0), (0, n_pad - action_size)))

    # Batch tiling: small batches use one block equal to the full array
    # (always layout-legal); large batches stream in TB-row tiles.
    TB = B if B <= batch_tile else batch_tile
    grid = (pl.cdiv(B, TB),)

    def resident(shape):
        # Constant block index -> fetched once, stays in VMEM across the grid.
        return pl.BlockSpec(shape, lambda i, _shape_len=len(shape): (0,) * _shape_len)

    in_specs = [
        pl.BlockSpec((TB, S), lambda i: (i, 0)),
        resident(params["w1"].shape), resident(params["b1"].shape),
        resident(params["w2"].shape), resident(params["b2"].shape),
        resident(params["w3"].shape), resident(params["b3"].shape),
        resident(w4.shape), resident(b4.shape),
    ]
    out_spec = pl.BlockSpec((TB, n_pad), lambda i: (i, 0))

    # Advisory cost estimate so XLA schedules the custom call tightly.
    flops = 2 * B * (S * HIDDEN1 + HIDDEN1 * HIDDEN2
                     + HIDDEN2 * HIDDEN3 + HIDDEN3 * n_pad)
    weight_bytes = 4 * (S * HIDDEN1 + HIDDEN1 + HIDDEN1 * HIDDEN2 + HIDDEN2
                        + HIDDEN2 * HIDDEN3 + HIDDEN3
                        + HIDDEN3 * n_pad + n_pad)
    bytes_accessed = 4 * (B * S + B * n_pad) + weight_bytes

    out_padded = pl.pallas_call(
        _actor_kernel,
        out_shape=jax.ShapeDtypeStruct((B, n_pad), jnp.float32),
        grid=grid,
        in_specs=in_specs,
        out_specs=out_spec,
        compiler_params=pltpu.CompilerParams(
            dimension_semantics=("parallel",)),
        cost_estimate=pl.CostEstimate(
            flops=flops,
            transcendentals=B * n_pad,
            bytes_accessed=bytes_accessed),
    )(state,
      params["w1"], params["b1"],
      params["w2"], params["b2"],
      params["w3"], params["b3"],
      w4, b4)

    return out_padded[:, :action_size]


def init_actor_params(key, state_size, action_size):
    """Deterministic init mirroring the PyTorch module:
       fc1..fc3 weights: kaiming_uniform (fan_in, gain=sqrt(2))
       fc4 weight:       xavier_uniform
       biases:           U(-1/sqrt(fan_in), 1/sqrt(fan_in))  (nn.Linear default)
    Weights are stored transposed as (in, out)."""
    dims = [(state_size, HIDDEN1), (HIDDEN1, HIDDEN2),
            (HIDDEN2, HIDDEN3), (HIDDEN3, action_size)]
    keys = jax.random.split(key, 8)
    params = {}
    for i, (fan_in, fan_out) in enumerate(dims):
        wk, bk = keys[2 * i], keys[2 * i + 1]
        if i < 3:  # kaiming_uniform: bound = sqrt(2) * sqrt(3 / fan_in)
            bound = math.sqrt(6.0 / fan_in)
        else:      # xavier_uniform: bound = sqrt(6 / (fan_in + fan_out))
            bound = math.sqrt(6.0 / (fan_in + fan_out))
        w = jax.random.uniform(wk, (fan_in, fan_out), jnp.float32,
                               minval=-bound, maxval=bound)
        b_bound = 1.0 / math.sqrt(fan_in)
        b = jax.random.uniform(bk, (1, fan_out), jnp.float32,
                               minval=-b_bound, maxval=b_bound)
        params[f"w{i + 1}"] = w
        params[f"b{i + 1}"] = b
    return params


if __name__ == "__main__":
    state_size = 16
    action_size = 4
    batch = 2

    key = jax.random.PRNGKey(0)
    pkey, xkey = jax.random.split(key)

    params = init_actor_params(pkey, state_size, action_size)
    state = jax.random.normal(xkey, (batch, state_size), jnp.float32)

    # Pure-JAX reference of the same math.
    def ref(x, p):
        h = jnp.maximum(x @ p["w1"] + p["b1"], 0.0)
        h = jnp.maximum(h @ p["w2"] + p["b2"], 0.0)
        h = jnp.maximum(h @ p["w3"] + p["b3"], 0.0)
        return jnp.tanh(h @ p["w4"] + p["b4"])

    # Small-batch path (single block, grid of 1).
    out = jax.block_until_ready(actor_forward(state, params))
    expected = ref(state, params)
    assert out.shape == (batch, action_size)
    assert jnp.allclose(out, expected, atol=1e-5, rtol=1e-5)

    # Larger, non-divisible batch to exercise the tiled/pipelined path.
    big_state = jax.random.normal(jax.random.PRNGKey(1), (1000, state_size),
                                  jnp.float32)
    big_out = jax.block_until_ready(
        actor_forward(big_state, params, batch_tile=256))
    assert big_out.shape == (1000, action_size)
    assert jnp.allclose(big_out, ref(big_state, params), atol=1e-5, rtol=1e-5)

    print("KERNEL_OK")
</pallas_src>

<mosaic_0001>
module attributes {stable_mosaic.version = 11 : i64} {
  func.func @_actor_kernel(%arg0: i32, %arg1: memref<2x16xf32, #tpu.memory_space<vmem>>, %arg2: memref<16x32xf32, #tpu.memory_space<vmem>>, %arg3: memref<1x32xf32, #tpu.memory_space<vmem>>, %arg4: memref<32x64xf32, #tpu.memory_space<vmem>>, %arg5: memref<1x64xf32, #tpu.memory_space<vmem>>, %arg6: memref<64x64xf32, #tpu.memory_space<vmem>>, %arg7: memref<1x64xf32, #tpu.memory_space<vmem>>, %arg8: memref<64x128xf32, #tpu.memory_space<vmem>>, %arg9: memref<1x128xf32, #tpu.memory_space<vmem>>, %arg10: memref<2x128xf32, #tpu.memory_space<vmem>>) attributes {dimension_semantics = [#tpu.dimension_semantics<parallel>], iteration_bounds = array<i64: 1>, scalar_prefetch = 0 : i64, scratch_operands = 0 : i64, tpu.core_type = #tpu.core_type<tc>, window_params = [{transform_indices = @transform_0, window_bounds = array<i64: 2, 16>}, {pipeline_mode = #tpu.pipeline_mode<synchronous>, transform_indices = @transform_1, window_bounds = array<i64: 16, 32>}, {pipeline_mode = #tpu.pipeline_mode<synchronous>, transform_indices = @transform_2, window_bounds = array<i64: 1, 32>}, {pipeline_mode = #tpu.pipeline_mode<synchronous>, transform_indices = @transform_3, window_bounds = array<i64: 32, 64>}, {pipeline_mode = #tpu.pipeline_mode<synchronous>, transform_indices = @transform_4, window_bounds = array<i64: 1, 64>}, {pipeline_mode = #tpu.pipeline_mode<synchronous>, transform_indices = @transform_5, window_bounds = array<i64: 64, 64>}, {pipeline_mode = #tpu.pipeline_mode<synchronous>, transform_indices = @transform_6, window_bounds = array<i64: 1, 64>}, {pipeline_mode = #tpu.pipeline_mode<synchronous>, transform_indices = @transform_7, window_bounds = array<i64: 64, 128>}, {pipeline_mode = #tpu.pipeline_mode<synchronous>, transform_indices = @transform_8, window_bounds = array<i64: 1, 128>}, {transform_indices = @transform_9, window_bounds = array<i64: 2, 128>}]} {
    %c0 = arith.constant 0 : index
    %c0_0 = arith.constant 0 : index
    %0 = vector.load %arg1[%c0, %c0_0] : memref<2x16xf32, #tpu.memory_space<vmem>>, vector<2x16xf32>
    %c0_1 = arith.constant 0 : index
    %c0_2 = arith.constant 0 : index
    %1 = vector.load %arg2[%c0_1, %c0_2] : memref<16x32xf32, #tpu.memory_space<vmem>>, vector<16x32xf32>
    %cst = arith.constant dense<0.000000e+00> : vector<2x32xf32>
    %2 = tpu.matmul %0, %1, %cst {dimension_numbers = #tpu.dot_dimension_numbers<[1], [0], [0], [1], [0, 0, 1, 1], [], []>} : vector<2x16xf32>, vector<16x32xf32>, vector<2x32xf32> -> vector<2x32xf32>
    %c0_3 = arith.constant 0 : index
    %c0_4 = arith.constant 0 : index
    %3 = vector.load %arg3[%c0_3, %c0_4] : memref<1x32xf32, #tpu.memory_space<vmem>>, vector<1x32xf32>
    %4 = vector.broadcast %3 : vector<1x32xf32> to vector<2x32xf32>
    %5 = arith.addf %2, %4 : vector<2x32xf32>
    %cst_5 = arith.constant 0.000000e+00 : f32
    %6 = vector.broadcast %cst_5 : f32 to vector<2x32xf32>
    %7 = arith.maximumf %5, %6 : vector<2x32xf32>
    %c0_6 = arith.constant 0 : index
    %c0_7 = arith.constant 0 : index
    %8 = vector.load %arg4[%c0_6, %c0_7] : memref<32x64xf32, #tpu.memory_space<vmem>>, vector<32x64xf32>
    %cst_8 = arith.constant dense<0.000000e+00> : vector<2x64xf32>
    %9 = tpu.matmul %7, %8, %cst_8 {dimension_numbers = #tpu.dot_dimension_numbers<[1], [0], [0], [1], [0, 0, 1, 1], [], []>} : vector<2x32xf32>, vector<32x64xf32>, vector<2x64xf32> -> vector<2x64xf32>
    %c0_9 = arith.constant 0 : index
    %c0_10 = arith.constant 0 : index
    %10 = vector.load %arg5[%c0_9, %c0_10] : memref<1x64xf32, #tpu.memory_space<vmem>>, vector<1x64xf32>
    %11 = vector.broadcast %10 : vector<1x64xf32> to vector<2x64xf32>
    %12 = arith.addf %9, %11 : vector<2x64xf32>
    %cst_11 = arith.constant 0.000000e+00 : f32
    %13 = vector.broadcast %cst_11 : f32 to vector<2x64xf32>
    %14 = arith.maximumf %12, %13 : vector<2x64xf32>
    %c0_12 = arith.constant 0 : index
    %c0_13 = arith.constant 0 : index
    %15 = vector.load %arg6[%c0_12, %c0_13] : memref<64x64xf32, #tpu.memory_space<vmem>>, vector<64x64xf32>
    %cst_14 = arith.constant dense<0.000000e+00> : vector<2x64xf32>
    %16 = tpu.matmul %14, %15, %cst_14 {dimension_numbers = #tpu.dot_dimension_numbers<[1], [0], [0], [1], [0, 0, 1, 1], [], []>} : vector<2x64xf32>, vector<64x64xf32>, vector<2x64xf32> -> vector<2x64xf32>
    %c0_15 = arith.constant 0 : index
    %c0_16 = arith.constant 0 : index
    %17 = vector.load %arg7[%c0_15, %c0_16] : memref<1x64xf32, #tpu.memory_space<vmem>>, vector<1x64xf32>
    %18 = vector.broadcast %17 : vector<1x64xf32> to vector<2x64xf32>
    %19 = arith.addf %16, %18 : vector<2x64xf32>
    %cst_17 = arith.constant 0.000000e+00 : f32
    %20 = vector.broadcast %cst_17 : f32 to vector<2x64xf32>
    %21 = arith.maximumf %19, %20 : vector<2x64xf32>
    %c0_18 = arith.constant 0 : index
    %c0_19 = arith.constant 0 : index
    %22 = vector.load %arg8[%c0_18, %c0_19] : memref<64x128xf32, #tpu.memory_space<vmem>>, vector<64x128xf32>
    %cst_20 = arith.constant dense<0.000000e+00> : vector<2x128xf32>
    %23 = tpu.matmul %21, %22, %cst_20 {dimension_numbers = #tpu.dot_dimension_numbers<[1], [0], [0], [1], [0, 0, 1, 1], [], []>} : vector<2x64xf32>, vector<64x128xf32>, vector<2x128xf32> -> vector<2x128xf32>
    %c0_21 = arith.constant 0 : index
    %c0_22 = arith.constant 0 : index
    %24 = vector.load %arg9[%c0_21, %c0_22] : memref<1x128xf32, #tpu.memory_space<vmem>>, vector<1x128xf32>
    %25 = vector.broadcast %24 : vector<1x128xf32> to vector<2x128xf32>
    %26 = arith.addf %23, %25 : vector<2x128xf32>
    %27 = math.tanh %26 : vector<2x128xf32>
    %c0_23 = arith.constant 0 : index
    %c0_24 = arith.constant 0 : index
    %28 = vector.load %arg10[%c0_23, %c0_24] : memref<2x128xf32, #tpu.memory_space<vmem>>, vector<2x128xf32>
    tpu.vector_store %arg10[%c0_23, %c0_24], %27 {strides = array<i32>} : memref<2x128xf32, #tpu.memory_space<vmem>>, vector<2x128xf32>,
    return
  }
  func.func @transform_0(%arg0: i32) -> (i32, i32) {
    %c0_i32 = arith.constant 0 : i32
    %c0_i32_0 = arith.constant 0 : i32
    return %arg0, %c0_i32 : i32, i32
  }
  func.func @transform_1(%arg0: i32) -> (i32, i32) {
    %c0_i32 = arith.constant 0 : i32
    %c0_i32_0 = arith.constant 0 : i32
    %c0_i32_1 = arith.constant 0 : i32
    return %c0_i32, %c0_i32_0 : i32, i32
  }
  func.func @transform_2(%arg0: i32) -> (i32, i32) {
    %c0_i32 = arith.constant 0 : i32
    %c0_i32_0 = arith.constant 0 : i32
    %c0_i32_1 = arith.constant 0 : i32
    return %c0_i32, %c0_i32_0 : i32, i32
  }
  func.func @transform_3(%arg0: i32) -> (i32, i32) {
    %c0_i32 = arith.constant 0 : i32
    %c0_i32_0 = arith.constant 0 : i32
    %c0_i32_1 = arith.constant 0 : i32
    return %c0_i32, %c0_i32_0 : i32, i32
  }
  func.func @transform_4(%arg0: i32) -> (i32, i32) {
    %c0_i32 = arith.constant 0 : i32
    %c0_i32_0 = arith.constant 0 : i32
    %c0_i32_1 = arith.constant 0 : i32
    return %c0_i32, %c0_i32_0 : i32, i32
  }
  func.func @transform_5(%arg0: i32) -> (i32, i32) {
    %c0_i32 = arith.constant 0 : i32
    %c0_i32_0 = arith.constant 0 : i32
    %c0_i32_1 = arith.constant 0 : i32
    return %c0_i32, %c0_i32_0 : i32, i32
  }
  func.func @transform_6(%arg0: i32) -> (i32, i32) {
    %c0_i32 = arith.constant 0 : i32
    %c0_i32_0 = arith.constant 0 : i32
    %c0_i32_1 = arith.constant 0 : i32
    return %c0_i32, %c0_i32_0 : i32, i32
  }
  func.func @transform_7(%arg0: i32) -> (i32, i32) {
    %c0_i32 = arith.constant 0 : i32
    %c0_i32_0 = arith.constant 0 : i32
    %c0_i32_1 = arith.constant 0 : i32
    return %c0_i32, %c0_i32_0 : i32, i32
  }
  func.func @transform_8(%arg0: i32) -> (i32, i32) {
    %c0_i32 = arith.constant 0 : i32
    %c0_i32_0 = arith.constant 0 : i32
    %c0_i32_1 = arith.constant 0 : i32
    return %c0_i32, %c0_i32_0 : i32, i32
  }
  func.func @transform_9(%arg0: i32) -> (i32, i32) {
    %c0_i32 = arith.constant 0 : i32
    %c0_i32_0 = arith.constant 0 : i32
    return %arg0, %c0_i32 : i32, i32
  }
}

</mosaic_0001>

<llo_original>
// kernel: tpu_custom_call.1
$region0: #{tpu_custom_call.1}
  #allocation0 [shape = 'u32[]', space=smem, size = 0x4, offset = 0x4, fixed_abs, tag = 'smem constant byte address 0x4 - core index']
  #allocation1 [shape = 'u32[72,128]{1,0:T(1,128)}', space=vmem, size = 0x9000, scoped, tag = 'internal scratch']
  %s0 = inlined_call_operand.hbm [shape: f32[2,16], index: 0, kind: input, shape index: {}]
  %s1 = inlined_call_operand.hbm [shape: f32[16,32], index: 1, kind: input, shape index: {}]
  %s2 = inlined_call_operand.vmem [shape: f32[1,32], index: 2, kind: input, shape index: {}]
  %s3 = inlined_call_operand.hbm [shape: f32[32,64], index: 3, kind: input, shape index: {}]
  %s4 = inlined_call_operand.vmem [shape: f32[1,64], index: 4, kind: input, shape index: {}]
  %s5 = inlined_call_operand.hbm [shape: f32[64,64], index: 5, kind: input, shape index: {}]
  %s6 = inlined_call_operand.vmem [shape: f32[1,64], index: 6, kind: input, shape index: {}]
  %s7 = inlined_call_operand.hbm [shape: f32[64,128], index: 7, kind: input, shape index: {}]
  %s8 = inlined_call_operand.vmem [shape: f32[1,128], index: 8, kind: input, shape index: {}]
  %s9 = inlined_call_operand.hbm [shape: f32[2,128], index: 9, kind: output, shape index: {}]
  %s10 = sld [smem:[#allocation0]]
  $region66: #{tpu_custom_call.1} parent=0
    _
  %s12 = ssub.s32 1, %s10
  %s13 = scalar_select 0, %s12, %s10
  $region1: #{tpu_custom_call.1} parent=0
    #allocation2 [shape = 'u8[1024]{0}', space=vmem, size = 0x400, scoped, tag = 'input window, operand 0, single buffered']
    #allocation3 [shape = 's32[1]{0}', space=sflag, size = 0x4, scoped, tag = 'scoped memory for tpu_custom_call.1']
    #allocation4 [shape = 's32[1]{0}', space=sflag, size = 0x4, scoped, tag = 'scoped memory for tpu_custom_call.1']
    #allocation5 [shape = 'u8[8192]{0}', space=vmem, size = 0x2000, scoped, tag = 'input window, operand 1, single buffered']
    #allocation6 [shape = 's32[1]{0}', space=sflag, size = 0x4, scoped, tag = 'scoped memory for tpu_custom_call.1']
    #allocation7 [shape = 'u8[16384]{0}', space=vmem, size = 0x4000, scoped, tag = 'input window, operand 3, single buffered']
    #allocation8 [shape = 'u8[32768]{0}', space=vmem, size = 0x8000, scoped, tag = 'input window, operand 5, single buffered']
    #allocation9 [shape = 's32[1]{0}', space=sflag, size = 0x4, scoped, tag = 'scoped memory for tpu_custom_call.1']
    #allocation10 [shape = 'u8[32768]{0}', space=vmem, size = 0x8000, scoped, tag = 'input window, operand 7, single buffered']
    #allocation11 [shape = 'u8[1024]{0}', space=vmem, size = 0x400, scoped, tag = 'output window, operand 0, single buffered']
    %14 = vsyncpa [#allocation3], 0
    %15 = vsyncpa [#allocation6], 0
    %16 = vsyncpa [#allocation9], 0
    %17 = vsyncpa [#allocation4], 0
    // Predicated region
    $region2: #{tpu_custom_call.1} parent=1 // pred_check
      _
    $region3: #{tpu_custom_call.1} parent=1 // pred_check_branch
      %19 = sbr.rel (0) target = $region5
    $region4: #{tpu_custom_call.1} parent=1 // pred_region
      %21 = vsyncadd [#allocation3], 0
      %s23 = sshll.u32 %s0, 4
      %s24 = int_to_ptr.hbm [resolvable:$true] %s23
      %s25 = sshll.u32 [#allocation2], 4
      %s26 = int_to_ptr.vmem [resolvable:$true] %s25
      %28 = dma.hbm_to_vmem [thread:$0]  %s24, 32, %s26, [#allocation3]
    $region5: #{tpu_custom_call.1} parent=1 // pred_fallthru
      _
    // Predicated region
    $region6: #{tpu_custom_call.1} parent=1 // pred_check
      _
    $region7: #{tpu_custom_call.1} parent=1 // pred_check_branch
      %30 = sbr.rel (0) target = $region9
    $region8: #{tpu_custom_call.1} parent=1 // pred_region
      %32 = vsyncadd [#allocation6], 0
      %s33 = sshll.u32 %s1, 4
      %s34 = int_to_ptr.hbm [resolvable:$true] %s33
      %s35 = sshll.u32 [#allocation5], 4
      %s36 = int_to_ptr.vmem [resolvable:$true] %s35
      %41 = dma.hbm_to_vmem [thread:$0]  %s34, 256, %s36, [#allocation6], 128, 128, 8
    $region9: #{tpu_custom_call.1} parent=1 // pred_fallthru
      _
    // Predicated region
    $region10: #{tpu_custom_call.1} parent=1 // pred_check
      _
    $region11: #{tpu_custom_call.1} parent=1 // pred_check_branch
      %43 = sbr.rel (0) target = $region13
    $region12: #{tpu_custom_call.1} parent=1 // pred_region
      _
    $region13: #{tpu_custom_call.1} parent=1 // pred_fallthru
      _
    // Predicated region
    $region14: #{tpu_custom_call.1} parent=1 // pred_check
      _
    $region15: #{tpu_custom_call.1} parent=1 // pred_check_branch
      %45 = sbr.rel (0) target = $region17
    $region16: #{tpu_custom_call.1} parent=1 // pred_region
      %47 = vsyncadd [#allocation6], 0
      %s48 = sshll.u32 %s3, 4
      %s49 = int_to_ptr.hbm [resolvable:$true] %s48
      %s50 = sshll.u32 [#allocation7], 4
      %s51 = int_to_ptr.vmem [resolvable:$true] %s50
      %56 = dma.hbm_to_vmem [thread:$0]  %s49, 512, %s51, [#allocation6], 128, 128, 8
    $region17: #{tpu_custom_call.1} parent=1 // pred_fallthru
      _
    // Predicated region
    $region18: #{tpu_custom_call.1} parent=1 // pred_check
      _
    $region19: #{tpu_custom_call.1} parent=1 // pred_check_branch
      %58 = sbr.rel (0) target = $region21
    $region20: #{tpu_custom_call.1} parent=1 // pred_region
      _
    $region21: #{tpu_custom_call.1} parent=1 // pred_fallthru
      _
    // Predicated region
    $region22: #{tpu_custom_call.1} parent=1 // pred_check
      _
    $region23: #{tpu_custom_call.1} parent=1 // pred_check_branch
      %60 = sbr.rel (0) target = $region25
    $region24: #{tpu_custom_call.1} parent=1 // pred_region
      %62 = vsyncadd [#allocation9], 0
      %s63 = sshll.u32 %s5, 4
      %s64 = int_to_ptr.hbm [resolvable:$true] %s63
      %s65 = sshll.u32 [#allocation8], 4
      %s66 = int_to_ptr.vmem [resolvable:$true] %s65
      %71 = dma.hbm_to_vmem [thread:$0]  %s64, 1024, %s66, [#allocation9], 128, 128, 8
    $region25: #{tpu_custom_call.1} parent=1 // pred_fallthru
      _
    // Predicated region
    $region26: #{tpu_custom_call.1} parent=1 // pred_check
      _
    $region27: #{tpu_custom_call.1} parent=1 // pred_check_branch
      %73 = sbr.rel (0) target = $region29
    $region28: #{tpu_custom_call.1} parent=1 // pred_region
      _
    $region29: #{tpu_custom_call.1} parent=1 // pred_fallthru
      _
    // Predicated region
    $region30: #{tpu_custom_call.1} parent=1 // pred_check
      _
    $region31: #{tpu_custom_call.1} parent=1 // pred_check_branch
      %75 = sbr.rel (0) target = $region33
    $region32: #{tpu_custom_call.1} parent=1 // pred_region
      %77 = vsyncadd [#allocation9], 0
      %s78 = sshll.u32 %s7, 4
      %s79 = int_to_ptr.hbm [resolvable:$true] %s78
      %s80 = sshll.u32 [#allocation10], 4
      %s81 = int_to_ptr.vmem [resolvable:$true] %s80
      %86 = dma.hbm_to_vmem [thread:$0]  %s79, 1024, %s81, [#allocation9], 128, 128, 8
    $region33: #{tpu_custom_call.1} parent=1 // pred_fallthru
      _
    // Predicated region
    $region34: #{tpu_custom_call.1} parent=1 // pred_check
      _
    $region35: #{tpu_custom_call.1} parent=1 // pred_check_branch
      %88 = sbr.rel (0) target = $region37
    $region36: #{tpu_custom_call.1} parent=1 // pred_region
      _
    $region37: #{tpu_custom_call.1} parent=1 // pred_fallthru
      _
    // Predicated region
    $region38: #{tpu_custom_call.1} parent=1 // pred_check
      _
    $region39: #{tpu_custom_call.1} parent=1 // pred_check_branch
      %90 = sbr.rel (0) target = $region41
    $region40: #{tpu_custom_call.1} parent=1 // pred_region
      %92 = dma.done [#allocation3], 32
    $region41: #{tpu_custom_call.1} parent=1 // pred_fallthru
      _
    // Predicated region
    $region42: #{tpu_custom_call.1} parent=1 // pred_check
      _
    $region43: #{tpu_custom_call.1} parent=1 // pred_check_branch
      %94 = sbr.rel (0) target = $region45
    $region44: #{tpu_custom_call.1} parent=1 // pred_region
      %96 = dma.done [#allocation6], 256
    $region45: #{tpu_custom_call.1} parent=1 // pred_fallthru
      _
    // Predicated region
    $region46: #{tpu_custom_call.1} parent=1 // pred_check
      _
    $region47: #{tpu_custom_call.1} parent=1 // pred_check_branch
      %98 = sbr.rel (0) target = $region49
    $region48: #{tpu_custom_call.1} parent=1 // pred_region
      %100 = dma.done [#allocation6], 512
    $region49: #{tpu_custom_call.1} parent=1 // pred_fallthru
      _
    // Predicated region
    $region50: #{tpu_custom_call.1} parent=1 // pred_check
      _
    $region51: #{tpu_custom_call.1} parent=1 // pred_check_branch
      %102 = sbr.rel (0) target = $region53
    $region52: #{tpu_custom_call.1} parent=1 // pred_region
      %104 = dma.done [#allocation9], 1024
    $region53: #{tpu_custom_call.1} parent=1 // pred_fallthru
      _
    // Predicated region
    $region54: #{tpu_custom_call.1} parent=1 // pred_check
      _
    $region55: #{tpu_custom_call.1} parent=1 // pred_check_branch
      %106 = sbr.rel (0) target = $region57
    $region56: #{tpu_custom_call.1} parent=1 // pred_region
      %108 = dma.done [#allocation9], 1024
    $region57: #{tpu_custom_call.1} parent=1 // pred_fallthru
      _
    %v109 = vld [vmem:[#allocation2] sm:$0x3]
    %v110 = vld [vmem:[#allocation5] sm:$0xff]
    %v111 = vld [vmem:[#allocation5 + $0x8] sm:$0xff]
    %v112 = vld [vmem:[%s2] sm:$0x1]
    %v114 = vperm.slane %v112, 0
    %vm116 = vcmask 130048
    %v118 = vsel %vm116, %v109, 0
    %120 = vmatpush.msra.mxu0 0.0
    %121 = vmatpush.msra.mxu0 0.0
    %122 = vmatpush.msra.mxu0 0.0
    %123 = vmatpush.msra.mxu0 0.0
    %124 = vmatpush.msra.mxu0 0.0
    %125 = vmatpush.msra.mxu0 0.0
    %126 = vmatpush.msra.mxu0 0.0
    %127 = vmatpush.msra.mxu0 0.0
    %128 = vmatpush.msra.mxu0 0.0
    %129 = vmatpush.msra.mxu0 0.0
    %130 = vmatpush.msra.mxu0 0.0
    %131 = vmatpush.msra.mxu0 0.0
    %132 = vmatpush.msra.mxu0 0.0
    %133 = vmatpush.msra.mxu0 0.0
    %134 = vmatpush.msra.mxu0 %v111
    %135 = vmatpush.msra.mxu0 %v110
    %136 = vmatmul.f32.gmra.mxu0 %v118
    %v137 = vpop.f32.mrf.mxu0
    %v138 = vadd.f32 %v114, %v137
    %139 = vdwg.mxu0
    %v140 = vmax.f32 %v138, 0.0
    %v141 = vld [vmem:[#allocation7] sm:$0xff]
    %v142 = vld [vmem:[#allocation7 + $0x8] sm:$0xff]
    %v143 = vld [vmem:[#allocation7 + $0x10] sm:$0xff]
    %v144 = vld [vmem:[#allocation7 + $0x18] sm:$0xff]
    %v145 = vld [vmem:[%s4] sm:$0x1]
    %v147 = vperm.slane %v145, 0
    %vm149 = vcmask 261120
    %v151 = vsel %vm149, %v140, 0
    %153 = vmatpush.msra.mxu0 0.0
    %154 = vmatpush.msra.mxu0 0.0
    %155 = vmatpush.msra.mxu0 0.0
    %156 = vmatpush.msra.mxu0 0.0
    %157 = vmatpush.msra.mxu0 0.0
    %158 = vmatpush.msra.mxu0 0.0
    %159 = vmatpush.msra.mxu0 0.0
    %160 = vmatpush.msra.mxu0 0.0
    %161 = vmatpush.msra.mxu0 0.0
    %162 = vmatpush.msra.mxu0 0.0
    %163 = vmatpush.msra.mxu0 0.0
    %164 = vmatpush.msra.mxu0 0.0
    %165 = vmatpush.msra.mxu0 %v144
    %166 = vmatpush.msra.mxu0 %v143
    %167 = vmatpush.msra.mxu0 %v142
    %168 = vmatpush.msra.mxu0 %v141
    %169 = vmatmul.f32.gmra.mxu0 %v151
    %v170 = vpop.f32.mrf.mxu0
    %v171 = vadd.f32 %v147, %v170
    %172 = vdwg.mxu0
    %v173 = vmax.f32 %v171, 0.0
    %v174 = vld [vmem:[#allocation8] sm:$0xff]
    %v175 = vld [vmem:[#allocation8 + $0x8] sm:$0xff]
    %v176 = vld [vmem:[#allocation8 + $0x10] sm:$0xff]
    %v177 = vld [vmem:[#allocation8 + $0x18] sm:$0xff]
    %v178 = vld [vmem:[#allocation8 + $0x20] sm:$0xff]
    %v179 = vld [vmem:[#allocation8 + $0x28] sm:$0xff]
    %v180 = vld [vmem:[#allocation8 + $0x30] sm:$0xff]
    %v181 = vld [vmem:[#allocation8 + $0x38] sm:$0xff]
    %v182 = vld [vmem:[%s6] sm:$0x1]
    %v184 = vperm.slane %v182, 0
    %vm186 = vcmask 523264
    %v188 = vsel %vm186, %v173, 0
    %190 = vmatpush.msra.mxu0 0.0
    %191 = vmatpush.msra.mxu0 0.0
    %192 = vmatpush.msra.mxu0 0.0
    %193 = vmatpush.msra.mxu0 0.0
    %194 = vmatpush.msra.mxu0 0.0
    %195 = vmatpush.msra.mxu0 0.0
    %196 = vmatpush.msra.mxu0 0.0
    %197 = vmatpush.msra.mxu0 0.0
    %198 = vmatpush.msra.mxu0 %v181
    %199 = vmatpush.msra.mxu0 %v180
    %200 = vmatpush.msra.mxu0 %v179
    %201 = vmatpush.msra.mxu0 %v178
    %202 = vmatpush.msra.mxu0 %v177
    %203 = vmatpush.msra.mxu0 %v176
    %204 = vmatpush.msra.mxu0 %v175
    %205 = vmatpush.msra.mxu0 %v174
    %206 = vmatmul.f32.gmra.mxu0 %v188
    %v207 = vpop.f32.mrf.mxu0
    %v208 = vadd.f32 %v184, %v207
    %209 = vdwg.mxu0
    %v210 = vmax.f32 %v208, 0.0
    %v211 = vld [vmem:[#allocation10] sm:$0xff]
    %v212 = vld [vmem:[#allocation10 + $0x8] sm:$0xff]
    %v213 = vld [vmem:[#allocation10 + $0x10] sm:$0xff]
    %v214 = vld [vmem:[#allocation10 + $0x18] sm:$0xff]
    %v215 = vld [vmem:[#allocation10 + $0x20] sm:$0xff]
    %v216 = vld [vmem:[#allocation10 + $0x28] sm:$0xff]
    %v217 = vld [vmem:[#allocation10 + $0x30] sm:$0xff]
    %v218 = vld [vmem:[#allocation10 + $0x38] sm:$0xff]
    %v219 = vld [vmem:[%s8] sm:$0x1]
    %v221 = vperm.slane %v219, 0
    %v224 = vsel %vm186, %v210, 0
    %226 = vmatpush.msra.mxu0 0.0
    %227 = vmatpush.msra.mxu0 0.0
    %228 = vmatpush.msra.mxu0 0.0
    %229 = vmatpush.msra.mxu0 0.0
    %230 = vmatpush.msra.mxu0 0.0
    %231 = vmatpush.msra.mxu0 0.0
    %232 = vmatpush.msra.mxu0 0.0
    %233 = vmatpush.msra.mxu0 0.0
    %234 = vmatpush.msra.mxu0 %v218
    %235 = vmatpush.msra.mxu0 %v217
    %236 = vmatpush.msra.mxu0 %v216
    %237 = vmatpush.msra.mxu0 %v215
    %238 = vmatpush.msra.mxu0 %v214
    %239 = vmatpush.msra.mxu0 %v213
    %240 = vmatpush.msra.mxu0 %v212
    %241 = vmatpush.msra.mxu0 %v211
    %242 = vmatmul.f32.gmra.mxu0 %v224
    %v243 = vpop.f32.mrf.mxu0
    %v244 = vadd.f32 %v221, %v243
    %245 = vdwg.mxu0
    %v246 = vtanh.pop %v244
    %247 = vst [vmem:[#allocation11] sm:$0x3] %v246
    // Predicated region
    $region58: #{tpu_custom_call.1} parent=1 // pred_check
      _
    $region59: #{tpu_custom_call.1} parent=1 // pred_check_branch
      %249 = sbr.rel (0) target = $region61
    $region60: #{tpu_custom_call.1} parent=1 // pred_region
      %251 = vsyncadd [#allocation4], 0
      %s253 = sshll.u32 [#allocation11], 4
      %s254 = int_to_ptr.vmem [resolvable:$true] %s253
      %s255 = sshll.u32 %s9, 4
      %s256 = int_to_ptr.hbm [resolvable:$true] %s255
      %258 = dma.vmem_to_hbm [thread:$0]  %s254, 32, %s256, [#allocation4]
    $region61: #{tpu_custom_call.1} parent=1 // pred_fallthru
      _
    // Predicated region
    $region62: #{tpu_custom_call.1} parent=1 // pred_check
      _
    $region63: #{tpu_custom_call.1} parent=1 // pred_check_branch
      %260 = sbr.rel (0) target = $region65
    $region64: #{tpu_custom_call.1} parent=1 // pred_region
      %262 = dma.done [#allocation4], 32
    $region65: #{tpu_custom_call.1} parent=1 // pred_fallthru
      _
    %263 = vsyncpa [#allocation3], 1
    %264 = vsyncpa [#allocation6], 1
    %265 = vsyncpa [#allocation9], 1
    %266 = vsyncpa [#allocation4], 1

</llo_original>
